<compile_context>
chip_gen: v7x
topology: tpu7x:2x2x1
jax: 0.10.0
libtpu: 0.0.40
codegen_flags: <defaults>
</compile_context>

<pallas_src>
import math

import jax
import jax.numpy as jnp
from jax.experimental import pallas as pl
from jax.experimental.pallas import tpu as pltpu

HIDDEN = 256
LANE = 128


def _round_up(x, m):
    return ((x + m - 1) // m) * m


def _mlp_kernel(x_ref, w1_ref, b1_ref, w2_ref, b2_ref, w3_ref, b3_ref, o_ref):
    # One (TM, input_size) batch tile per grid step; weights are resident across
    # grid iterations (constant index_map). Matmul inputs bf16, accumulate f32.
    x = x_ref[...]
    cdt = x.dtype

    h1 = jnp.dot(x, w1_ref[...], preferred_element_type=jnp.float32) + b1_ref[...]
    h1 = jnp.maximum(h1, 0.0).astype(cdt)

    h2 = jnp.dot(h1, w2_ref[...], preferred_element_type=jnp.float32) + b2_ref[...]
    h2 = jnp.maximum(h2, 0.0).astype(cdt)

    y = jnp.dot(h2, w3_ref[...], preferred_element_type=jnp.float32) + b3_ref[...]
    o_ref[...] = y.astype(o_ref.dtype)


def fully_connected_forward(x, prepared_params, num_classes):
    """x: (B, ...) flattened to (B, input_size) row-major (== x.view(B, -1) on NCHW).

    prepared_params: output of prepare_params() (bf16 weights, f32 biases,
    last layer lane-padded). Returns (B, num_classes) float32.
    """
    w1, b1, w2, b2, w3p, b3p = prepared_params
    b = x.shape[0]
    input_size = w1.shape[0]
    n_pad = w3p.shape[1]
    compute_dtype = w1.dtype

    x2d = x.reshape(b, -1).astype(compute_dtype)

    # TM = 256 fills the MXU M dimension at large batch; for tiny batches use
    # the smallest (8-aligned) tile. TM*input_size*2B stays well under the
    # smallest-generation VMEM budget (v7x 64 MiB / v5e 16 MiB scoped default).
    tm = min(256, _round_up(b, 8))
    grid = (pl.cdiv(b, tm),)

    flops = 2 * b * (input_size * HIDDEN + HIDDEN * HIDDEN + HIDDEN * n_pad)
    bytes_accessed = (
        x2d.size * x2d.dtype.itemsize
        + sum(p.size * p.dtype.itemsize for p in prepared_params)
        + b * n_pad * 4
    )

    out_padded = pl.pallas_call(
        _mlp_kernel,
        out_shape=jax.ShapeDtypeStruct((b, n_pad), jnp.float32),
        grid=grid,
        in_specs=[
            pl.BlockSpec((tm, input_size), lambda i: (i, 0)),      # x tile
            pl.BlockSpec((input_size, HIDDEN), lambda i: (0, 0)),  # W1 (resident)
            pl.BlockSpec((1, HIDDEN), lambda i: (0, 0)),           # b1
            pl.BlockSpec((HIDDEN, HIDDEN), lambda i: (0, 0)),      # W2
            pl.BlockSpec((1, HIDDEN), lambda i: (0, 0)),           # b2
            pl.BlockSpec((HIDDEN, n_pad), lambda i: (0, 0)),       # W3 (lane-padded)
            pl.BlockSpec((1, n_pad), lambda i: (0, 0)),            # b3
        ],
        out_specs=pl.BlockSpec((tm, n_pad), lambda i: (i, 0)),
        compiler_params=pltpu.CompilerParams(
            dimension_semantics=("parallel",)),
        cost_estimate=pl.CostEstimate(
            flops=flops, transcendentals=0, bytes_accessed=bytes_accessed),
    )(x2d, w1, b1, w2, b2, w3p, b3p)

    # Layout plumbing only: drop the zero-padded lanes of the final layer.
    return out_padded[:, :num_classes]


def init_params(key, input_size, num_classes):
    """Deterministic PyTorch-style (uniform +/- 1/sqrt(fan_in)) init, in f32.

    Weights are returned already transposed to (in_features, out_features);
    biases as (1, out_features) for clean broadcasting in-kernel.
    """
    def linear_init(k, fan_in, fan_out):
        kw, kb = jax.random.split(k)
        bound = 1.0 / math.sqrt(fan_in)
        w_t = jax.random.uniform(kw, (fan_in, fan_out), jnp.float32, -bound, bound)
        bias = jax.random.uniform(kb, (1, fan_out), jnp.float32, -bound, bound)
        return w_t, bias

    k1, k2, k3 = jax.random.split(key, 3)
    w1, b1 = linear_init(k1, input_size, HIDDEN)
    w2, b2 = linear_init(k2, HIDDEN, HIDDEN)
    w3, b3 = linear_init(k3, HIDDEN, num_classes)
    return (w1, b1, w2, b2, w3, b3)


def prepare_params(params_f32, compute_dtype=jnp.bfloat16):
    """One-time param prep: cast weights to bf16, keep biases f32, and
    zero-pad the final layer's output dim to a multiple of 128 lanes."""
    w1, b1, w2, b2, w3, b3 = params_f32
    num_classes = w3.shape[1]
    n_pad = _round_up(num_classes, LANE)
    w3p = jnp.zeros((w3.shape[0], n_pad), jnp.float32).at[:, :num_classes].set(w3)
    b3p = jnp.zeros((1, n_pad), jnp.float32).at[:, :num_classes].set(b3)
    return (
        w1.astype(compute_dtype), b1.astype(jnp.float32),
        w2.astype(compute_dtype), b2.astype(jnp.float32),
        w3p.astype(compute_dtype), b3p.astype(jnp.float32),
    )


def reference_forward_f32(x, params_f32):
    """Pure-f32 reference of the PyTorch module's forward()."""
    b = x.shape[0]
    x2d = x.reshape(b, -1)
    w1, b1, w2, b2, w3, b3 = params_f32
    h1 = jnp.maximum(x2d @ w1 + b1, 0.0)
    h2 = jnp.maximum(h1 @ w2 + b2, 0.0)
    return h2 @ w3 + b3


def reference_forward_mixed(x, prepared_params, num_classes):
    """Plain-XLA reference using the same bf16-input / f32-accumulate arithmetic."""
    w1, b1, w2, b2, w3p, b3p = prepared_params
    b = x.shape[0]
    cdt = w1.dtype
    x2d = x.reshape(b, -1).astype(cdt)
    h1 = jnp.maximum(jnp.dot(x2d, w1, preferred_element_type=jnp.float32) + b1, 0.0).astype(cdt)
    h2 = jnp.maximum(jnp.dot(h1, w2, preferred_element_type=jnp.float32) + b2, 0.0).astype(cdt)
    y = jnp.dot(h2, w3p, preferred_element_type=jnp.float32) + b3p
    return y[:, :num_classes]


if __name__ == "__main__":
    key = jax.random.PRNGKey(0)
    kx, kp = jax.random.split(key)

    # Small NCHW-like input: batch=2, channels=4, spatial=16x16 -> input_size=1024
    B, C, H, W = 2, 4, 16, 16
    input_size = C * H * W
    num_classes = 10

    x = jax.random.normal(kx, (B, C, H, W), dtype=jnp.float32)
    params_f32 = init_params(kp, input_size, num_classes)
    prepared = prepare_params(params_f32)

    out = jax.block_until_ready(fully_connected_forward(x, prepared, num_classes))
    assert out.shape == (B, num_classes), out.shape

    # Tight check vs an XLA reference with identical mixed-precision arithmetic.
    ref_mixed = reference_forward_mixed(x, prepared, num_classes)
    assert jnp.allclose(out, ref_mixed, atol=2e-3, rtol=2e-3), "mismatch vs mixed-precision reference"

    # Loose check vs the pure-f32 module semantics (bf16 input rounding only).
    ref_f32 = reference_forward_f32(x, params_f32)
    assert jnp.allclose(out, ref_f32, atol=3e-2, rtol=3e-2), "mismatch vs f32 reference"

    # TODO(synk): penalty() (L2 weight-norm regularizer) is training-time only and not
    # part of forward(); intentionally not implemented as a kernel.
    # NOTE: if input_size grows beyond a few thousand features, add a K-reduction grid
    # axis for the first matmul (W1 would no longer fit VMEM-resident).
    print("KERNEL_OK")
</pallas_src>

<mosaic_0001>
module attributes {stable_mosaic.version = 11 : i64} {
  func.func @_mlp_kernel(%arg0: i32, %arg1: memref<8x1024xbf16, #tpu.memory_space<vmem>>, %arg2: memref<1024x256xbf16, #tpu.memory_space<vmem>>, %arg3: memref<1x256xf32, #tpu.memory_space<vmem>>, %arg4: memref<256x256xbf16, #tpu.memory_space<vmem>>, %arg5: memref<1x256xf32, #tpu.memory_space<vmem>>, %arg6: memref<256x128xbf16, #tpu.memory_space<vmem>>, %arg7: memref<1x128xf32, #tpu.memory_space<vmem>>, %arg8: memref<8x128xf32, #tpu.memory_space<vmem>>) attributes {dimension_semantics = [#tpu.dimension_semantics<parallel>], iteration_bounds = array<i64: 1>, scalar_prefetch = 0 : i64, scratch_operands = 0 : i64, tpu.core_type = #tpu.core_type<tc>, window_params = [{transform_indices = @transform_0, window_bounds = array<i64: 8, 1024>}, {pipeline_mode = #tpu.pipeline_mode<synchronous>, transform_indices = @transform_1, window_bounds = array<i64: 1024, 256>}, {pipeline_mode = #tpu.pipeline_mode<synchronous>, transform_indices = @transform_2, window_bounds = array<i64: 1, 256>}, {pipeline_mode = #tpu.pipeline_mode<synchronous>, transform_indices = @transform_3, window_bounds = array<i64: 256, 256>}, {pipeline_mode = #tpu.pipeline_mode<synchronous>, transform_indices = @transform_4, window_bounds = array<i64: 1, 256>}, {pipeline_mode = #tpu.pipeline_mode<synchronous>, transform_indices = @transform_5, window_bounds = array<i64: 256, 128>}, {pipeline_mode = #tpu.pipeline_mode<synchronous>, transform_indices = @transform_6, window_bounds = array<i64: 1, 128>}, {transform_indices = @transform_7, window_bounds = array<i64: 8, 128>}]} {
    %c0 = arith.constant 0 : index
    %c0_0 = arith.constant 0 : index
    %0 = vector.load %arg1[%c0, %c0_0] : memref<8x1024xbf16, #tpu.memory_space<vmem>>, vector<8x1024xbf16>
    %c0_1 = arith.constant 0 : index
    %c0_2 = arith.constant 0 : index
    %1 = vector.load %arg2[%c0_1, %c0_2] : memref<1024x256xbf16, #tpu.memory_space<vmem>>, vector<1024x256xbf16>
    %cst = arith.constant dense<0.000000e+00> : vector<8x256xf32>
    %2 = tpu.matmul %0, %1, %cst {dimension_numbers = #tpu.dot_dimension_numbers<[1], [0], [0], [1], [0, 0, 1, 1], [], []>} : vector<8x1024xbf16>, vector<1024x256xbf16>, vector<8x256xf32> -> vector<8x256xf32>
    %c0_3 = arith.constant 0 : index
    %c0_4 = arith.constant 0 : index
    %3 = vector.load %arg3[%c0_3, %c0_4] : memref<1x256xf32, #tpu.memory_space<vmem>>, vector<1x256xf32>
    %4 = vector.broadcast %3 : vector<1x256xf32> to vector<8x256xf32>
    %5 = arith.addf %2, %4 : vector<8x256xf32>
    %cst_5 = arith.constant 0.000000e+00 : f32
    %6 = vector.broadcast %cst_5 : f32 to vector<8x256xf32>
    %7 = arith.maximumf %5, %6 : vector<8x256xf32>
    %8 = arith.truncf %7 : vector<8x256xf32> to vector<8x256xbf16>
    %c0_6 = arith.constant 0 : index
    %c0_7 = arith.constant 0 : index
    %9 = vector.load %arg4[%c0_6, %c0_7] : memref<256x256xbf16, #tpu.memory_space<vmem>>, vector<256x256xbf16>
    %cst_8 = arith.constant dense<0.000000e+00> : vector<8x256xf32>
    %10 = tpu.matmul %8, %9, %cst_8 {dimension_numbers = #tpu.dot_dimension_numbers<[1], [0], [0], [1], [0, 0, 1, 1], [], []>} : vector<8x256xbf16>, vector<256x256xbf16>, vector<8x256xf32> -> vector<8x256xf32>
    %c0_9 = arith.constant 0 : index
    %c0_10 = arith.constant 0 : index
    %11 = vector.load %arg5[%c0_9, %c0_10] : memref<1x256xf32, #tpu.memory_space<vmem>>, vector<1x256xf32>
    %12 = vector.broadcast %11 : vector<1x256xf32> to vector<8x256xf32>
    %13 = arith.addf %10, %12 : vector<8x256xf32>
    %cst_11 = arith.constant 0.000000e+00 : f32
    %14 = vector.broadcast %cst_11 : f32 to vector<8x256xf32>
    %15 = arith.maximumf %13, %14 : vector<8x256xf32>
    %16 = arith.truncf %15 : vector<8x256xf32> to vector<8x256xbf16>
    %c0_12 = arith.constant 0 : index
    %c0_13 = arith.constant 0 : index
    %17 = vector.load %arg6[%c0_12, %c0_13] : memref<256x128xbf16, #tpu.memory_space<vmem>>, vector<256x128xbf16>
    %cst_14 = arith.constant dense<0.000000e+00> : vector<8x128xf32>
    %18 = tpu.matmul %16, %17, %cst_14 {dimension_numbers = #tpu.dot_dimension_numbers<[1], [0], [0], [1], [0, 0, 1, 1], [], []>} : vector<8x256xbf16>, vector<256x128xbf16>, vector<8x128xf32> -> vector<8x128xf32>
    %c0_15 = arith.constant 0 : index
    %c0_16 = arith.constant 0 : index
    %19 = vector.load %arg7[%c0_15, %c0_16] : memref<1x128xf32, #tpu.memory_space<vmem>>, vector<1x128xf32>
    %20 = vector.broadcast %19 : vector<1x128xf32> to vector<8x128xf32>
    %21 = arith.addf %18, %20 : vector<8x128xf32>
    %c0_17 = arith.constant 0 : index
    %c0_18 = arith.constant 0 : index
    %22 = vector.load %arg8[%c0_17, %c0_18] : memref<8x128xf32, #tpu.memory_space<vmem>>, vector<8x128xf32>
    tpu.vector_store %arg8[%c0_17, %c0_18], %21 {strides = array<i32>} : memref<8x128xf32, #tpu.memory_space<vmem>>, vector<8x128xf32>,
    return
  }
  func.func @transform_0(%arg0: i32) -> (i32, i32) {
    %c0_i32 = arith.constant 0 : i32
    %c0_i32_0 = arith.constant 0 : i32
    return %arg0, %c0_i32 : i32, i32
  }
  func.func @transform_1(%arg0: i32) -> (i32, i32) {
    %c0_i32 = arith.constant 0 : i32
    %c0_i32_0 = arith.constant 0 : i32
    %c0_i32_1 = arith.constant 0 : i32
    return %c0_i32, %c0_i32_0 : i32, i32
  }
  func.func @transform_2(%arg0: i32) -> (i32, i32) {
    %c0_i32 = arith.constant 0 : i32
    %c0_i32_0 = arith.constant 0 : i32
    %c0_i32_1 = arith.constant 0 : i32
    return %c0_i32, %c0_i32_0 : i32, i32
  }
  func.func @transform_3(%arg0: i32) -> (i32, i32) {
    %c0_i32 = arith.constant 0 : i32
    %c0_i32_0 = arith.constant 0 : i32
    %c0_i32_1 = arith.constant 0 : i32
    return %c0_i32, %c0_i32_0 : i32, i32
  }
  func.func @transform_4(%arg0: i32) -> (i32, i32) {
    %c0_i32 = arith.constant 0 : i32
    %c0_i32_0 = arith.constant 0 : i32
    %c0_i32_1 = arith.constant 0 : i32
    return %c0_i32, %c0_i32_0 : i32, i32
  }
  func.func @transform_5(%arg0: i32) -> (i32, i32) {
    %c0_i32 = arith.constant 0 : i32
    %c0_i32_0 = arith.constant 0 : i32
    %c0_i32_1 = arith.constant 0 : i32
    return %c0_i32, %c0_i32_0 : i32, i32
  }
  func.func @transform_6(%arg0: i32) -> (i32, i32) {
    %c0_i32 = arith.constant 0 : i32
    %c0_i32_0 = arith.constant 0 : i32
    %c0_i32_1 = arith.constant 0 : i32
    return %c0_i32, %c0_i32_0 : i32, i32
  }
  func.func @transform_7(%arg0: i32) -> (i32, i32) {
    %c0_i32 = arith.constant 0 : i32
    %c0_i32_0 = arith.constant 0 : i32
    return %arg0, %c0_i32 : i32, i32
  }
}

</mosaic_0001>

<llo_original>
// kernel: tpu_custom_call.1
$region0: #{tpu_custom_call.1}
  #allocation0 [shape = 'u32[]', space=smem, size = 0x4, offset = 0x4, fixed_abs, tag = 'smem constant byte address 0x4 - core index']
  #allocation1 [shape = 'u32[144,128]{1,0:T(1,128)}', space=vmem, size = 0x12000, scoped, tag = 'internal scratch']
  %s0 = inlined_call_operand.hbm [shape: bf16[2,1024], index: 0, kind: input, shape index: {}]
  %s1 = inlined_call_operand.hbm [shape: bf16[1024,256], index: 1, kind: input, shape index: {}]
  %s2 = inlined_call_operand.vmem [shape: f32[1,256], index: 2, kind: input, shape index: {}]
  %s3 = inlined_call_operand.hbm [shape: bf16[256,256], index: 3, kind: input, shape index: {}]
  %s4 = inlined_call_operand.vmem [shape: f32[1,256], index: 4, kind: input, shape index: {}]
  %s5 = inlined_call_operand.hbm [shape: bf16[256,128], index: 5, kind: input, shape index: {}]
  %s6 = inlined_call_operand.vmem [shape: f32[1,128], index: 6, kind: input, shape index: {}]
  %s7 = inlined_call_operand.hbm [shape: f32[2,128], index: 7, kind: output, shape index: {}]
  %s8 = sld [smem:[#allocation0]]
  $region54: #{tpu_custom_call.1} parent=0
    _
  %s10 = ssub.s32 1, %s8
  %s11 = scalar_select 0, %s10, %s8
  $region1: #{tpu_custom_call.1} parent=0
    #allocation2 [shape = 'u8[16384]{0}', space=vmem, size = 0x4000, scoped, tag = 'input window, operand 0, single buffered']
    #allocation3 [shape = 's32[1]{0}', space=sflag, size = 0x4, scoped, tag = 'scoped memory for tpu_custom_call.1']
    #allocation4 [shape = 's32[1]{0}', space=sflag, size = 0x4, scoped, tag = 'scoped memory for tpu_custom_call.1']
    #allocation5 [shape = 'u8[524288]{0}', space=vmem, size = 0x80000, scoped, tag = 'input window, operand 1, single buffered']
    #allocation6 [shape = 's32[1]{0}', space=sflag, size = 0x4, scoped, tag = 'scoped memory for tpu_custom_call.1']
    #allocation7 [shape = 'u8[131072]{0}', space=vmem, size = 0x20000, scoped, tag = 'input window, operand 3, single buffered']
    #allocation8 [shape = 'u8[65536]{0}', space=vmem, size = 0x10000, scoped, tag = 'input window, operand 5, single buffered']
    #allocation9 [shape = 's32[1]{0}', space=sflag, size = 0x4, scoped, tag = 'scoped memory for tpu_custom_call.1']
    #allocation10 [shape = 'u8[4096]{0}', space=vmem, size = 0x1000, scoped, tag = 'output window, operand 0, single buffered']
    %12 = vsyncpa [#allocation3], 0
    %13 = vsyncpa [#allocation6], 0
    %14 = vsyncpa [#allocation9], 0
    %15 = vsyncpa [#allocation4], 0
    // Predicated region
    $region2: #{tpu_custom_call.1} parent=1 // pred_check
      _
    $region3: #{tpu_custom_call.1} parent=1 // pred_check_branch
      %17 = sbr.rel (0) target = $region5
    $region4: #{tpu_custom_call.1} parent=1 // pred_region
      %s19 = ssub.s32 512, 128
      %20 = vsyncadd [#allocation3], %s19
      %s21 = sshll.u32 [#allocation2], 4
      %s22 = int_to_ptr.vmem [resolvable:$true] %s21
      %27 = dma.hbm_to_vmem [thread:$0]  %s0, 128, %s22, [#allocation3], 128, 128, 8
    $region5: #{tpu_custom_call.1} parent=1 // pred_fallthru
      _
    // Predicated region
    $region6: #{tpu_custom_call.1} parent=1 // pred_check
      _
    $region7: #{tpu_custom_call.1} parent=1 // pred_check_branch
      %29 = sbr.rel (0) target = $region9
    $region8: #{tpu_custom_call.1} parent=1 // pred_region
      %s31 = ssub.s32 16384, 16384
      %32 = vsyncadd [#allocation6], %s31
      %s33 = sshll.u32 [#allocation5], 4
      %s34 = int_to_ptr.vmem [resolvable:$true] %s33
      %39 = dma.hbm_to_vmem [thread:$0]  %s1, 16384, %s34, [#allocation6], 128, 128, 8
    $region9: #{tpu_custom_call.1} parent=1 // pred_fallthru
      _
    // Predicated region
    $region10: #{tpu_custom_call.1} parent=1 // pred_check
      _
    $region11: #{tpu_custom_call.1} parent=1 // pred_check_branch
      %41 = sbr.rel (0) target = $region13
    $region12: #{tpu_custom_call.1} parent=1 // pred_region
      _
    $region13: #{tpu_custom_call.1} parent=1 // pred_fallthru
      _
    // Predicated region
    $region14: #{tpu_custom_call.1} parent=1 // pred_check
      _
    $region15: #{tpu_custom_call.1} parent=1 // pred_check_branch
      %43 = sbr.rel (0) target = $region17
    $region16: #{tpu_custom_call.1} parent=1 // pred_region
      %s45 = ssub.s32 4096, 4096
      %46 = vsyncadd [#allocation6], %s45
      %s47 = sshll.u32 [#allocation7], 4
      %s48 = int_to_ptr.vmem [resolvable:$true] %s47
      %53 = dma.hbm_to_vmem [thread:$0]  %s3, 4096, %s48, [#allocation6], 128, 128, 8
    $region17: #{tpu_custom_call.1} parent=1 // pred_fallthru
      _
    // Predicated region
    $region18: #{tpu_custom_call.1} parent=1 // pred_check
      _
    $region19: #{tpu_custom_call.1} parent=1 // pred_check_branch
      %55 = sbr.rel (0) target = $region21
    $region20: #{tpu_custom_call.1} parent=1 // pred_region
      _
    $region21: #{tpu_custom_call.1} parent=1 // pred_fallthru
      _
    // Predicated region
    $region22: #{tpu_custom_call.1} parent=1 // pred_check
      _
    $region23: #{tpu_custom_call.1} parent=1 // pred_check_branch
      %57 = sbr.rel (0) target = $region25
    $region24: #{tpu_custom_call.1} parent=1 // pred_region
      %s59 = ssub.s32 2048, 2048
      %60 = vsyncadd [#allocation9], %s59
      %s61 = sshll.u32 [#allocation8], 4
      %s62 = int_to_ptr.vmem [resolvable:$true] %s61
      %67 = dma.hbm_to_vmem [thread:$0]  %s5, 2048, %s62, [#allocation9], 64, 64, 4
    $region25: #{tpu_custom_call.1} parent=1 // pred_fallthru
      _
    // Predicated region
    $region26: #{tpu_custom_call.1} parent=1 // pred_check
      _
    $region27: #{tpu_custom_call.1} parent=1 // pred_check_branch
      %69 = sbr.rel (0) target = $region29
    $region28: #{tpu_custom_call.1} parent=1 // pred_region
      _
    $region29: #{tpu_custom_call.1} parent=1 // pred_fallthru
      _
    // Predicated region
    $region30: #{tpu_custom_call.1} parent=1 // pred_check
      _
    $region31: #{tpu_custom_call.1} parent=1 // pred_check_branch
      %71 = sbr.rel (0) target = $region33
    $region32: #{tpu_custom_call.1} parent=1 // pred_region
      %72 = dma.done [#allocation3], 512
    $region33: #{tpu_custom_call.1} parent=1 // pred_fallthru
      _
    // Predicated region
    $region34: #{tpu_custom_call.1} parent=1 // pred_check
      _
    $region35: #{tpu_custom_call.1} parent=1 // pred_check_branch
      %74 = sbr.rel (0) target = $region37
    $region36: #{tpu_custom_call.1} parent=1 // pred_region
      %75 = dma.done [#allocation6], 16384
    $region37: #{tpu_custom_call.1} parent=1 // pred_fallthru
      _
    // Predicated region
    $region38: #{tpu_custom_call.1} parent=1 // pred_check
      _
    $region39: #{tpu_custom_call.1} parent=1 // pred_check_branch
      %77 = sbr.rel (0) target = $region41
    $region40: #{tpu_custom_call.1} parent=1 // pred_region
      %78 = dma.done [#allocation6], 4096
    $region41: #{tpu_custom_call.1} parent=1 // pred_fallthru
      _
    // Predicated region
    $region42: #{tpu_custom_call.1} parent=1 // pred_check
      _
    $region43: #{tpu_custom_call.1} parent=1 // pred_check_branch
      %80 = sbr.rel (0) target = $region45
    $region44: #{tpu_custom_call.1} parent=1 // pred_region
      %81 = dma.done [#allocation9], 2048
    $region45: #{tpu_custom_call.1} parent=1 // pred_fallthru
      _
    %v83 = vld [vmem:[#allocation2] sm:$0xff]
    %v84 = vld [vmem:[#allocation2 + $0x8] sm:$0xff]
    %v85 = vld [vmem:[#allocation2 + $0x10] sm:$0xff]
    %v86 = vld [vmem:[#allocation2 + $0x18] sm:$0xff]
    %v87 = vld [vmem:[#allocation5] sm:$0xff]
    %v88 = vld [vmem:[#allocation5 + $0x8] sm:$0xff]
    %v89 = vld [vmem:[#allocation5 + $0x10] sm:$0xff]
    %v90 = vld [vmem:[#allocation5 + $0x18] sm:$0xff]
    %v91 = vld [vmem:[#allocation5 + $0x20] sm:$0xff]
    %v92 = vld [vmem:[#allocation5 + $0x28] sm:$0xff]
    %v93 = vld [vmem:[#allocation5 + $0x30] sm:$0xff]
    %v94 = vld [vmem:[#allocation5 + $0x38] sm:$0xff]
    %v95 = vld [vmem:[#allocation5 + $0x40] sm:$0xff]
    %v96 = vld [vmem:[#allocation5 + $0x48] sm:$0xff]
    %v97 = vld [vmem:[#allocation5 + $0x50] sm:$0xff]
    %v98 = vld [vmem:[#allocation5 + $0x58] sm:$0xff]
    %v99 = vld [vmem:[#allocation5 + $0x60] sm:$0xff]
    %v100 = vld [vmem:[#allocation5 + $0x68] sm:$0xff]
    %v101 = vld [vmem:[#allocation5 + $0x70] sm:$0xff]
    %v102 = vld [vmem:[#allocation5 + $0x78] sm:$0xff]
    %v103 = vld [vmem:[#allocation5 + $0x80] sm:$0xff]
    %v104 = vld [vmem:[#allocation5 + $0x88] sm:$0xff]
    %v105 = vld [vmem:[#allocation5 + $0x90] sm:$0xff]
    %v106 = vld [vmem:[#allocation5 + $0x98] sm:$0xff]
    %v107 = vld [vmem:[#allocation5 + $0xa0] sm:$0xff]
    %v108 = vld [vmem:[#allocation5 + $0xa8] sm:$0xff]
    %v109 = vld [vmem:[#allocation5 + $0xb0] sm:$0xff]
    %v110 = vld [vmem:[#allocation5 + $0xb8] sm:$0xff]
    %v111 = vld [vmem:[#allocation5 + $0xc0] sm:$0xff]
    %v112 = vld [vmem:[#allocation5 + $0xc8] sm:$0xff]
    %v113 = vld [vmem:[#allocation5 + $0xd0] sm:$0xff]
    %v114 = vld [vmem:[#allocation5 + $0xd8] sm:$0xff]
    %v115 = vld [vmem:[#allocation5 + $0xe0] sm:$0xff]
    %v116 = vld [vmem:[#allocation5 + $0xe8] sm:$0xff]
    %v117 = vld [vmem:[#allocation5 + $0xf0] sm:$0xff]
    %v118 = vld [vmem:[#allocation5 + $0xf8] sm:$0xff]
    %v119 = vld [vmem:[#allocation5 + $0x100] sm:$0xff]
    %v120 = vld [vmem:[#allocation5 + $0x108] sm:$0xff]
    %v121 = vld [vmem:[#allocation5 + $0x110] sm:$0xff]
    %v122 = vld [vmem:[#allocation5 + $0x118] sm:$0xff]
    %v123 = vld [vmem:[#allocation5 + $0x120] sm:$0xff]
    %v124 = vld [vmem:[#allocation5 + $0x128] sm:$0xff]
    %v125 = vld [vmem:[#allocation5 + $0x130] sm:$0xff]
    %v126 = vld [vmem:[#allocation5 + $0x138] sm:$0xff]
    %v127 = vld [vmem:[#allocation5 + $0x140] sm:$0xff]
    %v128 = vld [vmem:[#allocation5 + $0x148] sm:$0xff]
    %v129 = vld [vmem:[#allocation5 + $0x150] sm:$0xff]
    %v130 = vld [vmem:[#allocation5 + $0x158] sm:$0xff]
    %v131 = vld [vmem:[#allocation5 + $0x160] sm:$0xff]
    %v132 = vld [vmem:[#allocation5 + $0x168] sm:$0xff]
    %v133 = vld [vmem:[#allocation5 + $0x170] sm:$0xff]
    %v134 = vld [vmem:[#allocation5 + $0x178] sm:$0xff]
    %v135 = vld [vmem:[#allocation5 + $0x180] sm:$0xff]
    %v136 = vld [vmem:[#allocation5 + $0x188] sm:$0xff]
    %v137 = vld [vmem:[#allocation5 + $0x190] sm:$0xff]
    %v138 = vld [vmem:[#allocation5 + $0x198] sm:$0xff]
    %v139 = vld [vmem:[#allocation5 + $0x1a0] sm:$0xff]
    %v140 = vld [vmem:[#allocation5 + $0x1a8] sm:$0xff]
    %v141 = vld [vmem:[#allocation5 + $0x1b0] sm:$0xff]
    %v142 = vld [vmem:[#allocation5 + $0x1b8] sm:$0xff]
    %v143 = vld [vmem:[#allocation5 + $0x1c0] sm:$0xff]
    %v144 = vld [vmem:[#allocation5 + $0x1c8] sm:$0xff]
    %v145 = vld [vmem:[#allocation5 + $0x1d0] sm:$0xff]
    %v146 = vld [vmem:[#allocation5 + $0x1d8] sm:$0xff]
    %v147 = vld [vmem:[#allocation5 + $0x1e0] sm:$0xff]
    %v148 = vld [vmem:[#allocation5 + $0x1e8] sm:$0xff]
    %v149 = vld [vmem:[#allocation5 + $0x1f0] sm:$0xff]
    %v150 = vld [vmem:[#allocation5 + $0x1f8] sm:$0xff]
    %v151 = vld [vmem:[#allocation5 + $0x200] sm:$0xff]
    %v152 = vld [vmem:[#allocation5 + $0x208] sm:$0xff]
    %v153 = vld [vmem:[#allocation5 + $0x210] sm:$0xff]
    %v154 = vld [vmem:[#allocation5 + $0x218] sm:$0xff]
    %v155 = vld [vmem:[#allocation5 + $0x220] sm:$0xff]
    %v156 = vld [vmem:[#allocation5 + $0x228] sm:$0xff]
    %v157 = vld [vmem:[#allocation5 + $0x230] sm:$0xff]
    %v158 = vld [vmem:[#allocation5 + $0x238] sm:$0xff]
    %v159 = vld [vmem:[#allocation5 + $0x240] sm:$0xff]
    %v160 = vld [vmem:[#allocation5 + $0x248] sm:$0xff]
    %v161 = vld [vmem:[#allocation5 + $0x250] sm:$0xff]
    %v162 = vld [vmem:[#allocation5 + $0x258] sm:$0xff]
    %v163 = vld [vmem:[#allocation5 + $0x260] sm:$0xff]
    %v164 = vld [vmem:[#allocation5 + $0x268] sm:$0xff]
    %v165 = vld [vmem:[#allocation5 + $0x270] sm:$0xff]
    %v166 = vld [vmem:[#allocation5 + $0x278] sm:$0xff]
    %v167 = vld [vmem:[#allocation5 + $0x280] sm:$0xff]
    %v168 = vld [vmem:[#allocation5 + $0x288] sm:$0xff]
    %v169 = vld [vmem:[#allocation5 + $0x290] sm:$0xff]
    %v170 = vld [vmem:[#allocation5 + $0x298] sm:$0xff]
    %v171 = vld [vmem:[#allocation5 + $0x2a0] sm:$0xff]
    %v172 = vld [vmem:[#allocation5 + $0x2a8] sm:$0xff]
    %v173 = vld [vmem:[#allocation5 + $0x2b0] sm:$0xff]
    %v174 = vld [vmem:[#allocation5 + $0x2b8] sm:$0xff]
    %v175 = vld [vmem:[#allocation5 + $0x2c0] sm:$0xff]
    %v176 = vld [vmem:[#allocation5 + $0x2c8] sm:$0xff]
    %v177 = vld [vmem:[#allocation5 + $0x2d0] sm:$0xff]
    %v178 = vld [vmem:[#allocation5 + $0x2d8] sm:$0xff]
    %v179 = vld [vmem:[#allocation5 + $0x2e0] sm:$0xff]
    %v180 = vld [vmem:[#allocation5 + $0x2e8] sm:$0xff]
    %v181 = vld [vmem:[#allocation5 + $0x2f0] sm:$0xff]
    %v182 = vld [vmem:[#allocation5 + $0x2f8] sm:$0xff]
    %v183 = vld [vmem:[#allocation5 + $0x300] sm:$0xff]
    %v184 = vld [vmem:[#allocation5 + $0x308] sm:$0xff]
    %v185 = vld [vmem:[#allocation5 + $0x310] sm:$0xff]
    %v186 = vld [vmem:[#allocation5 + $0x318] sm:$0xff]
    %v187 = vld [vmem:[#allocation5 + $0x320] sm:$0xff]
    %v188 = vld [vmem:[#allocation5 + $0x328] sm:$0xff]
    %v189 = vld [vmem:[#allocation5 + $0x330] sm:$0xff]
    %v190 = vld [vmem:[#allocation5 + $0x338] sm:$0xff]
    %v191 = vld [vmem:[#allocation5 + $0x340] sm:$0xff]
    %v192 = vld [vmem:[#allocation5 + $0x348] sm:$0xff]
    %v193 = vld [vmem:[#allocation5 + $0x350] sm:$0xff]
    %v194 = vld [vmem:[#allocation5 + $0x358] sm:$0xff]
    %v195 = vld [vmem:[#allocation5 + $0x360] sm:$0xff]
    %v196 = vld [vmem:[#allocation5 + $0x368] sm:$0xff]
    %v197 = vld [vmem:[#allocation5 + $0x370] sm:$0xff]
    %v198 = vld [vmem:[#allocation5 + $0x378] sm:$0xff]
    %v199 = vld [vmem:[#allocation5 + $0x380] sm:$0xff]
    %v200 = vld [vmem:[#allocation5 + $0x388] sm:$0xff]
    %v201 = vld [vmem:[#allocation5 + $0x390] sm:$0xff]
    %v202 = vld [vmem:[#allocation5 + $0x398] sm:$0xff]
    %v203 = vld [vmem:[#allocation5 + $0x3a0] sm:$0xff]
    %v204 = vld [vmem:[#allocation5 + $0x3a8] sm:$0xff]
    %v205 = vld [vmem:[#allocation5 + $0x3b0] sm:$0xff]
    %v206 = vld [vmem:[#allocation5 + $0x3b8] sm:$0xff]
    %v207 = vld [vmem:[#allocation5 + $0x3c0] sm:$0xff]
    %v208 = vld [vmem:[#allocation5 + $0x3c8] sm:$0xff]
    %v209 = vld [vmem:[#allocation5 + $0x3d0] sm:$0xff]
    %v210 = vld [vmem:[#allocation5 + $0x3d8] sm:$0xff]
    %v211 = vld [vmem:[#allocation5 + $0x3e0] sm:$0xff]
    %v212 = vld [vmem:[#allocation5 + $0x3e8] sm:$0xff]
    %v213 = vld [vmem:[#allocation5 + $0x3f0] sm:$0xff]
    %v214 = vld [vmem:[#allocation5 + $0x3f8] sm:$0xff]
    %v215 = vld [vmem:[%s2] sm:$0x3]
    %v217 = vlaneseq
    %v218 = vshrl.u32 %v217, 7
    %v219 = vsub.s32 0, %v218
    %v220 = vrot.slane %v215, %v219
    %v221 = vlaneseq
    %v222 = vshrl.u32 %v221, 7
    %v223 = vsub.s32 1, %v222
    %v224 = vrot.slane %v215, %v223
    %v231 = vcombine.low %v83, %v84
    %v232 = vcombine.high %v83, %v84
    %v233 = vcombine.low %v85, %v86
    %v234 = vcombine.high %v85, %v86
    %v236 = vunpack.c.l.s4 1966171168
    %v237 = vunpack.c.0.s8 %v236
    %v238 = vlaneseq
    %v239 = vshrl.u32 %v238, 7
    %v240 = vsub.s32 %v237, %v239
    %v241 = vrot.slane %v231, %v240
    %v243 = vunpack.c.l.s4 1966171168
    %v244 = vunpack.c.0.s8 %v243
    %v245 = vlaneseq
    %v246 = vshrl.u32 %v245, 7
    %v247 = vsub.s32 %v244, %v246
    %v248 = vrot.slane %v232, %v247
    %v250 = vunpack.c.l.s4 1966171168
    %v251 = vunpack.c.0.s8 %v250
    %v252 = vlaneseq
    %v253 = vshrl.u32 %v252, 7
    %v254 = vsub.s32 %v251, %v253
    %v255 = vrot.slane %v233, %v254
    %v257 = vunpack.c.l.s4 1966171168
    %v258 = vunpack.c.0.s8 %v257
    %v259 = vlaneseq
    %v260 = vshrl.u32 %v259, 7
    %v261 = vsub.s32 %v258, %v260
    %v262 = vrot.slane %v234, %v261
    %v263 = vcombine.low %v241, %v255
    %v264 = vcombine.high %v241, %v255
    %v265 = vcombine.low %v248, %v262
    %v266 = vcombine.high %v248, %v262
    %v268 = vunpack.c.l.s4 1966171168
    %v269 = vunpack.c.0.s8 %v268
    %v270 = vlaneseq
    %v271 = vshrl.u32 %v270, 7
    %v272 = vsub.s32 %v269, %v271
    %v273 = vrot.slane %v263, %v272
    %v275 = vunpack.c.l.s4 1966171168
    %v276 = vunpack.c.0.s8 %v275
    %v277 = vlaneseq
    %v278 = vshrl.u32 %v277, 7
    %v279 = vsub.s32 %v276, %v278
    %v280 = vrot.slane %v265, %v279
    %v282 = vunpack.c.l.s4 1966171168
    %v283 = vunpack.c.0.s8 %v282
    %v284 = vlaneseq
    %v285 = vshrl.u32 %v284, 7
    %v286 = vsub.s32 %v283, %v285
    %v287 = vrot.slane %v264, %v286
    %v289 = vunpack.c.l.s4 1966171168
    %v290 = vunpack.c.0.s8 %v289
    %v291 = vlaneseq
    %v292 = vshrl.u32 %v291, 7
    %v293 = vsub.s32 %v290, %v292
    %v294 = vrot.slane %v266, %v293
    %v295 = vcombine.high %v273, %v273
    %v296 = vcombine.high %v280, %v280
    %v297 = vcombine.high %v287, %v287
    %v298 = vcombine.high %v294, %v294
    %v435 = vunpack.c.l.b16 %v87
    %v436 = vunpack.c.h.b16 %v87
    %v437 = vunpack.c.l.b16 %v88
    %v438 = vunpack.c.h.b16 %v88
    %v439 = vunpack.c.l.b16 %v89
    %v440 = vunpack.c.h.b16 %v89
    %v441 = vunpack.c.l.b16 %v90
    %v442 = vunpack.c.h.b16 %v90
    %v443 = vunpack.c.l.b16 %v91
    %v444 = vunpack.c.h.b16 %v91
    %v445 = vunpack.c.l.b16 %v92
    %v446 = vunpack.c.h.b16 %v92
    %v447 = vunpack.c.l.b16 %v93
    %v448 = vunpack.c.h.b16 %v93
    %v449 = vunpack.c.l.b16 %v94
    %v450 = vunpack.c.h.b16 %v94
    %v451 = vunpack.c.l.b16 %v95
    %v452 = vunpack.c.h.b16 %v95
    %v453 = vunpack.c.l.b16 %v96
    %v454 = vunpack.c.h.b16 %v96
    %v455 = vunpack.c.l.b16 %v97
    %v456 = vunpack.c.h.b16 %v97
    %v457 = vunpack.c.l.b16 %v98
    %v458 = vunpack.c.h.b16 %v98
    %v459 = vunpack.c.l.b16 %v99
    %v460 = vunpack.c.h.b16 %v99
    %v461 = vunpack.c.l.b16 %v100
    %v462 = vunpack.c.h.b16 %v100
    %v463 = vunpack.c.l.b16 %v101
    %v464 = vunpack.c.h.b16 %v101
    %v465 = vunpack.c.l.b16 %v102
    %v466 = vunpack.c.h.b16 %v102
    %v467 = vunpack.c.l.b16 %v103
    %v468 = vunpack.c.h.b16 %v103
    %v469 = vunpack.c.l.b16 %v104
    %v470 = vunpack.c.h.b16 %v104
    %v471 = vunpack.c.l.b16 %v105
    %v472 = vunpack.c.h.b16 %v105
    %v473 = vunpack.c.l.b16 %v106
    %v474 = vunpack.c.h.b16 %v106
    %v475 = vunpack.c.l.b16 %v107
    %v476 = vunpack.c.h.b16 %v107
    %v477 = vunpack.c.l.b16 %v108
    %v478 = vunpack.c.h.b16 %v108
    %v479 = vunpack.c.l.b16 %v109
    %v480 = vunpack.c.h.b16 %v109
    %v481 = vunpack.c.l.b16 %v110
    %v482 = vunpack.c.h.b16 %v110
    %v483 = vunpack.c.l.b16 %v111
    %v484 = vunpack.c.h.b16 %v111
    %v485 = vunpack.c.l.b16 %v112
    %v486 = vunpack.c.h.b16 %v112
    %v487 = vunpack.c.l.b16 %v113
    %v488 = vunpack.c.h.b16 %v113
    %v489 = vunpack.c.l.b16 %v114
    %v490 = vunpack.c.h.b16 %v114
    %v491 = vunpack.c.l.b16 %v115
    %v492 = vunpack.c.h.b16 %v115
    %v493 = vunpack.c.l.b16 %v116
    %v494 = vunpack.c.h.b16 %v116
    %v495 = vunpack.c.l.b16 %v117
    %v496 = vunpack.c.h.b16 %v117
    %v497 = vunpack.c.l.b16 %v118
    %v498 = vunpack.c.h.b16 %v118
    %v499 = vunpack.c.l.b16 %v119
    %v500 = vunpack.c.h.b16 %v119
    %v501 = vunpack.c.l.b16 %v120
    %v502 = vunpack.c.h.b16 %v120
    %v503 = vunpack.c.l.b16 %v121
    %v504 = vunpack.c.h.b16 %v121
    %v505 = vunpack.c.l.b16 %v122
    %v506 = vunpack.c.h.b16 %v122
    %v507 = vunpack.c.l.b16 %v123
    %v508 = vunpack.c.h.b16 %v123
    %v509 = vunpack.c.l.b16 %v124
    %v510 = vunpack.c.h.b16 %v124
    %v511 = vunpack.c.l.b16 %v125
    %v512 = vunpack.c.h.b16 %v125
    %v513 = vunpack.c.l.b16 %v126
    %v514 = vunpack.c.h.b16 %v126
    %v515 = vunpack.c.l.b16 %v127
    %v516 = vunpack.c.h.b16 %v127
    %v517 = vunpack.c.l.b16 %v128
    %v518 = vunpack.c.h.b16 %v128
    %v519 = vunpack.c.l.b16 %v129
    %v520 = vunpack.c.h.b16 %v129
    %v521 = vunpack.c.l.b16 %v130
    %v522 = vunpack.c.h.b16 %v130
    %v523 = vunpack.c.l.b16 %v131
    %v524 = vunpack.c.h.b16 %v131
    %v525 = vunpack.c.l.b16 %v132
    %v526 = vunpack.c.h.b16 %v132
    %v527 = vunpack.c.l.b16 %v133
    %v528 = vunpack.c.h.b16 %v133
    %v529 = vunpack.c.l.b16 %v134
    %v530 = vunpack.c.h.b16 %v134
    %v531 = vunpack.c.l.b16 %v135
    %v532 = vunpack.c.h.b16 %v135
    %v533 = vunpack.c.l.b16 %v136
    %v534 = vunpack.c.h.b16 %v136
    %v535 = vunpack.c.l.b16 %v137
    %v536 = vunpack.c.h.b16 %v137
    %v537 = vunpack.c.l.b16 %v138
    %v538 = vunpack.c.h.b16 %v138
    %v539 = vunpack.c.l.b16 %v139
    %v540 = vunpack.c.h.b16 %v139
    %v541 = vunpack.c.l.b16 %v140
    %v542 = vunpack.c.h.b16 %v140
    %v543 = vunpack.c.l.b16 %v141
    %v544 = vunpack.c.h.b16 %v141
    %v545 = vunpack.c.l.b16 %v142
    %v546 = vunpack.c.h.b16 %v142
    %v547 = vunpack.c.l.b16 %v143
    %v548 = vunpack.c.h.b16 %v143
    %v549 = vunpack.c.l.b16 %v144
    %v550 = vunpack.c.h.b16 %v144
    %v551 = vunpack.c.l.b16 %v145
    %v552 = vunpack.c.h.b16 %v145
    %v553 = vunpack.c.l.b16 %v146
    %v554 = vunpack.c.h.b16 %v146
    %v555 = vunpack.c.l.b16 %v147
    %v556 = vunpack.c.h.b16 %v147
    %v557 = vunpack.c.l.b16 %v148
    %v558 = vunpack.c.h.b16 %v148
    %v559 = vunpack.c.l.b16 %v149
    %v560 = vunpack.c.h.b16 %v149
    %v561 = vunpack.c.l.b16 %v150
    %v562 = vunpack.c.h.b16 %v150
    %v563 = vunpack.c.l.b16 %v151
    %v564 = vunpack.c.h.b16 %v151
    %v565 = vunpack.c.l.b16 %v152
    %v566 = vunpack.c.h.b16 %v152
    %v567 = vunpack.c.l.b16 %v153
    %v568 = vunpack.c.h.b16 %v153
    %v569 = vunpack.c.l.b16 %v154
    %v570 = vunpack.c.h.b16 %v154
    %v571 = vunpack.c.l.b16 %v155
    %v572 = vunpack.c.h.b16 %v155
    %v573 = vunpack.c.l.b16 %v156
    %v574 = vunpack.c.h.b16 %v156
    %v575 = vunpack.c.l.b16 %v157
    %v576 = vunpack.c.h.b16 %v157
    %v577 = vunpack.c.l.b16 %v158
    %v578 = vunpack.c.h.b16 %v158
    %v579 = vunpack.c.l.b16 %v159
    %v580 = vunpack.c.h.b16 %v159
    %v581 = vunpack.c.l.b16 %v160
    %v582 = vunpack.c.h.b16 %v160
    %v583 = vunpack.c.l.b16 %v161
    %v584 = vunpack.c.h.b16 %v161
    %v585 = vunpack.c.l.b16 %v162
    %v586 = vunpack.c.h.b16 %v162
    %v587 = vunpack.c.l.b16 %v163
    %v588 = vunpack.c.h.b16 %v163
    %v589 = vunpack.c.l.b16 %v164
    %v590 = vunpack.c.h.b16 %v164
    %v591 = vunpack.c.l.b16 %v165
    %v592 = vunpack.c.h.b16 %v165
    %v593 = vunpack.c.l.b16 %v166
    %v594 = vunpack.c.h.b16 %v166
    %v595 = vunpack.c.l.b16 %v167
    %v596 = vunpack.c.h.b16 %v167
    %v597 = vunpack.c.l.b16 %v168
    %v598 = vunpack.c.h.b16 %v168
    %v599 = vunpack.c.l.b16 %v169
    %v600 = vunpack.c.h.b16 %v169
    %v601 = vunpack.c.l.b16 %v170
    %v602 = vunpack.c.h.b16 %v170
    %v603 = vunpack.c.l.b16 %v171
    %v604 = vunpack.c.h.b16 %v171
    %v605 = vunpack.c.l.b16 %v172
    %v606 = vunpack.c.h.b16 %v172
    %v607 = vunpack.c.l.b16 %v173
    %v608 = vunpack.c.h.b16 %v173
    %v609 = vunpack.c.l.b16 %v174
    %v610 = vunpack.c.h.b16 %v174
    %v611 = vunpack.c.l.b16 %v175
    %v612 = vunpack.c.h.b16 %v175
    %v613 = vunpack.c.l.b16 %v176
    %v614 = vunpack.c.h.b16 %v176
    %v615 = vunpack.c.l.b16 %v177
    %v616 = vunpack.c.h.b16 %v177
    %v617 = vunpack.c.l.b16 %v178
    %v618 = vunpack.c.h.b16 %v178
    %v619 = vunpack.c.l.b16 %v179
    %v620 = vunpack.c.h.b16 %v179
    %v621 = vunpack.c.l.b16 %v180
    %v622 = vunpack.c.h.b16 %v180
    %v623 = vunpack.c.l.b16 %v181
    %v624 = vunpack.c.h.b16 %v181
    %v625 = vunpack.c.l.b16 %v182
    %v626 = vunpack.c.h.b16 %v182
    %v627 = vunpack.c.l.b16 %v183
    %v628 = vunpack.c.h.b16 %v183
    %v629 = vunpack.c.l.b16 %v184
    %v630 = vunpack.c.h.b16 %v184
    %v631 = vunpack.c.l.b16 %v185
    %v632 = vunpack.c.h.b16 %v185
    %v633 = vunpack.c.l.b16 %v186
    %v634 = vunpack.c.h.b16 %v186
    %v635 = vunpack.c.l.b16 %v187
    %v636 = vunpack.c.h.b16 %v187
    %v637 = vunpack.c.l.b16 %v188
    %v638 = vunpack.c.h.b16 %v188
    %v639 = vunpack.c.l.b16 %v189
    %v640 = vunpack.c.h.b16 %v189
    %v641 = vunpack.c.l.b16 %v190
    %v642 = vunpack.c.h.b16 %v190
    %v643 = vunpack.c.l.b16 %v191
    %v644 = vunpack.c.h.b16 %v191
    %v645 = vunpack.c.l.b16 %v192
    %v646 = vunpack.c.h.b16 %v192
    %v647 = vunpack.c.l.b16 %v193
    %v648 = vunpack.c.h.b16 %v193
    %v649 = vunpack.c.l.b16 %v194
    %v650 = vunpack.c.h.b16 %v194
    %v651 = vunpack.c.l.b16 %v195
    %v652 = vunpack.c.h.b16 %v195
    %v653 = vunpack.c.l.b16 %v196
    %v654 = vunpack.c.h.b16 %v196
    %v655 = vunpack.c.l.b16 %v197
    %v656 = vunpack.c.h.b16 %v197
    %v657 = vunpack.c.l.b16 %v198
    %v658 = vunpack.c.h.b16 %v198
    %v659 = vunpack.c.l.b16 %v199
    %v660 = vunpack.c.h.b16 %v199
    %v661 = vunpack.c.l.b16 %v200
    %v662 = vunpack.c.h.b16 %v200
    %v663 = vunpack.c.l.b16 %v201
    %v664 = vunpack.c.h.b16 %v201
    %v665 = vunpack.c.l.b16 %v202
    %v666 = vunpack.c.h.b16 %v202
    %v667 = vunpack.c.l.b16 %v203
    %v668 = vunpack.c.h.b16 %v203
    %v669 = vunpack.c.l.b16 %v204
    %v670 = vunpack.c.h.b16 %v204
    %v671 = vunpack.c.l.b16 %v205
    %v672 = vunpack.c.h.b16 %v205
    %v673 = vunpack.c.l.b16 %v206
    %v674 = vunpack.c.h.b16 %v206
    %v675 = vunpack.c.l.b16 %v207
    %v676 = vunpack.c.h.b16 %v207
    %v677 = vunpack.c.l.b16 %v208
    %v678 = vunpack.c.h.b16 %v208
    %v679 = vunpack.c.l.b16 %v209
    %v680 = vunpack.c.h.b16 %v209
    %v681 = vunpack.c.l.b16 %v210
    %v682 = vunpack.c.h.b16 %v210
    %v683 = vunpack.c.l.b16 %v211
    %v684 = vunpack.c.h.b16 %v211
    %v685 = vunpack.c.l.b16 %v212
    %v686 = vunpack.c.h.b16 %v212
    %v687 = vunpack.c.l.b16 %v213
    %v688 = vunpack.c.h.b16 %v213
    %v689 = vunpack.c.l.b16 %v214
    %v690 = vunpack.c.h.b16 %v214
    %v691 = vpack.c.b16 %v437, %v435
    %v692 = vpack.c.b16 %v438, %v436
    %v693 = vpack.c.b16 %v441, %v439
    %v694 = vpack.c.b16 %v442, %v440
    %v695 = vpack.c.b16 %v445, %v443
    %v696 = vpack.c.b16 %v446, %v444
    %v697 = vpack.c.b16 %v449, %v447
    %v698 = vpack.c.b16 %v450, %v448
    %v699 = vpack.c.b16 %v453, %v451
    %v700 = vpack.c.b16 %v454, %v452
    %v701 = vpack.c.b16 %v457, %v455
    %v702 = vpack.c.b16 %v458, %v456
    %v703 = vpack.c.b16 %v461, %v459
    %v704 = vpack.c.b16 %v462, %v460
    %v705 = vpack.c.b16 %v465, %v463
    %v706 = vpack.c.b16 %v466, %v464
    %v707 = vpack.c.b16 %v469, %v467
    %v708 = vpack.c.b16 %v470, %v468
    %v709 = vpack.c.b16 %v473, %v471
    %v710 = vpack.c.b16 %v474, %v472
    %v711 = vpack.c.b16 %v477, %v475
    %v712 = vpack.c.b16 %v478, %v476
    %v713 = vpack.c.b16 %v481, %v479
    %v714 = vpack.c.b16 %v482, %v480
    %v715 = vpack.c.b16 %v485, %v483
    %v716 = vpack.c.b16 %v486, %v484
    %v717 = vpack.c.b16 %v489, %v487
    %v718 = vpack.c.b16 %v490, %v488
    %v719 = vpack.c.b16 %v493, %v491
    %v720 = vpack.c.b16 %v494, %v492
    %v721 = vpack.c.b16 %v497, %v495
    %v722 = vpack.c.b16 %v498, %v496
    %v723 = vpack.c.b16 %v501, %v499
    %v724 = vpack.c.b16 %v502, %v500
    %v725 = vpack.c.b16 %v505, %v503
    %v726 = vpack.c.b16 %v506, %v504
    %v727 = vpack.c.b16 %v509, %v507
    %v728 = vpack.c.b16 %v510, %v508
    %v729 = vpack.c.b16 %v513, %v511
    %v730 = vpack.c.b16 %v514, %v512
    %v731 = vpack.c.b16 %v517, %v515
    %v732 = vpack.c.b16 %v518, %v516
    %v733 = vpack.c.b16 %v521, %v519
    %v734 = vpack.c.b16 %v522, %v520
    %v735 = vpack.c.b16 %v525, %v523
    %v736 = vpack.c.b16 %v526, %v524
    %v737 = vpack.c.b16 %v529, %v527
    %v738 = vpack.c.b16 %v530, %v528
    %v739 = vpack.c.b16 %v533, %v531
    %v740 = vpack.c.b16 %v534, %v532
    %v741 = vpack.c.b16 %v537, %v535
    %v742 = vpack.c.b16 %v538, %v536
    %v743 = vpack.c.b16 %v541, %v539
    %v744 = vpack.c.b16 %v542, %v540
    %v745 = vpack.c.b16 %v545, %v543
    %v746 = vpack.c.b16 %v546, %v544
    %v747 = vpack.c.b16 %v549, %v547
    %v748 = vpack.c.b16 %v550, %v548
    %v749 = vpack.c.b16 %v553, %v551
    %v750 = vpack.c.b16 %v554, %v552
    %v751 = vpack.c.b16 %v557, %v555
    %v752 = vpack.c.b16 %v558, %v556
    %v753 = vpack.c.b16 %v561, %v559
    %v754 = vpack.c.b16 %v562, %v560
    %v755 = vpack.c.b16 %v565, %v563
    %v756 = vpack.c.b16 %v566, %v564
    %v757 = vpack.c.b16 %v569, %v567
    %v758 = vpack.c.b16 %v570, %v568
    %v759 = vpack.c.b16 %v573, %v571
    %v760 = vpack.c.b16 %v574, %v572
    %v761 = vpack.c.b16 %v577, %v575
    %v762 = vpack.c.b16 %v578, %v576
    %v763 = vpack.c.b16 %v581, %v579
    %v764 = vpack.c.b16 %v582, %v580
    %v765 = vpack.c.b16 %v585, %v583
    %v766 = vpack.c.b16 %v586, %v584
    %v767 = vpack.c.b16 %v589, %v587
    %v768 = vpack.c.b16 %v590, %v588
    %v769 = vpack.c.b16 %v593, %v591
    %v770 = vpack.c.b16 %v594, %v592
    %v771 = vpack.c.b16 %v597, %v595
    %v772 = vpack.c.b16 %v598, %v596
    %v773 = vpack.c.b16 %v601, %v599
    %v774 = vpack.c.b16 %v602, %v600
    %v775 = vpack.c.b16 %v605, %v603
    %v776 = vpack.c.b16 %v606, %v604
    %v777 = vpack.c.b16 %v609, %v607
    %v778 = vpack.c.b16 %v610, %v608
    %v779 = vpack.c.b16 %v613, %v611
    %v780 = vpack.c.b16 %v614, %v612
    %v781 = vpack.c.b16 %v617, %v615
    %v782 = vpack.c.b16 %v618, %v616
    %v783 = vpack.c.b16 %v621, %v619
    %v784 = vpack.c.b16 %v622, %v620
    %v785 = vpack.c.b16 %v625, %v623
    %v786 = vpack.c.b16 %v626, %v624
    %v787 = vpack.c.b16 %v629, %v627
    %v788 = vpack.c.b16 %v630, %v628
    %v789 = vpack.c.b16 %v633, %v631
    %v790 = vpack.c.b16 %v634, %v632
    %v791 = vpack.c.b16 %v637, %v635
    %v792 = vpack.c.b16 %v638, %v636
    %v793 = vpack.c.b16 %v641, %v639
    %v794 = vpack.c.b16 %v642, %v640
    %v795 = vpack.c.b16 %v645, %v643
    %v796 = vpack.c.b16 %v646, %v644
    %v797 = vpack.c.b16 %v649, %v647
    %v798 = vpack.c.b16 %v650, %v648
    %v799 = vpack.c.b16 %v653, %v651
    %v800 = vpack.c.b16 %v654, %v652
    %v801 = vpack.c.b16 %v657, %v655
    %v802 = vpack.c.b16 %v658, %v656
    %v803 = vpack.c.b16 %v661, %v659
    %v804 = vpack.c.b16 %v662, %v660
    %v805 = vpack.c.b16 %v665, %v663
    %v806 = vpack.c.b16 %v666, %v664
    %v807 = vpack.c.b16 %v669, %v667
    %v808 = vpack.c.b16 %v670, %v668
    %v809 = vpack.c.b16 %v673, %v671
    %v810 = vpack.c.b16 %v674, %v672
    %v811 = vpack.c.b16 %v677, %v675
    %v812 = vpack.c.b16 %v678, %v676
    %v813 = vpack.c.b16 %v681, %v679
    %v814 = vpack.c.b16 %v682, %v680
    %v815 = vpack.c.b16 %v685, %v683
    %v816 = vpack.c.b16 %v686, %v684
    %v817 = vpack.c.b16 %v689, %v687
    %v818 = vpack.c.b16 %v690, %v688
    %947 = vmatprep.subr.bf16.mxu0 %v692
    %948 = vmatpush1.bf16.msra.mxu0 %v691
    %949 = vmatprep.subr.bf16.mxu0 %v694
    %950 = vmatpush1.bf16.msra.mxu0 %v693
    %951 = vmatprep.subr.bf16.mxu0 %v696
    %952 = vmatpush1.bf16.msra.mxu0 %v695
    %953 = vmatprep.subr.bf16.mxu0 %v698
    %954 = vmatpush1.bf16.msra.mxu0 %v697
    %955 = vmatprep.subr.bf16.mxu0 %v700
    %956 = vmatpush1.bf16.msra.mxu0 %v699
    %957 = vmatprep.subr.bf16.mxu0 %v702
    %958 = vmatpush1.bf16.msra.mxu0 %v701
    %959 = vmatprep.subr.bf16.mxu0 %v704
    %960 = vmatpush1.bf16.msra.mxu0 %v703
    %961 = vmatprep.subr.bf16.mxu0 %v706
    %962 = vmatpush1.bf16.msra.mxu0 %v705
    %963 = vmatprep.subr.bf16.mxu0 %v708
    %964 = vmatpush1.bf16.msra.mxu0 %v707
    %965 = vmatprep.subr.bf16.mxu0 %v710
    %966 = vmatpush1.bf16.msra.mxu0 %v709
    %967 = vmatprep.subr.bf16.mxu0 %v712
    %968 = vmatpush1.bf16.msra.mxu0 %v711
    %969 = vmatprep.subr.bf16.mxu0 %v714
    %970 = vmatpush1.bf16.msra.mxu0 %v713
    %971 = vmatprep.subr.bf16.mxu0 %v716
    %972 = vmatpush1.bf16.msra.mxu0 %v715
    %973 = vmatprep.subr.bf16.mxu0 %v718
    %974 = vmatpush1.bf16.msra.mxu0 %v717
    %975 = vmatprep.subr.bf16.mxu0 %v720
    %976 = vmatpush1.bf16.msra.mxu0 %v719
    %977 = vmatprep.subr.bf16.mxu0 %v722
    %978 = vmatpush1.bf16.msra.mxu0 %v721
    %979 = vmatprep.mubr.bf16.mxu0 %v287
    %980 = vmatmul.mubr.bf16.gmra.mrb[0].mxu0 %v273
    %v981 = vpop.f32.mrb[0].mxu0
    %v982 = vadd.f32 %v220, %v981
    %v983 = vpop.f32.mrb[0].mxu0
    %v984 = vadd.f32 %v224, %v983
    %v985 = vpop.f32.mrb[0].mxu0
    %v986 = vpop.f32.mrb[0].mxu0
    %987 = vdwg.mxu0
    %988 = vmatprep.subr.bf16.mxu0 %v724
    %989 = vmatpush1.bf16.msra.mxu0 %v723
    %990 = vmatprep.subr.bf16.mxu0 %v726
    %991 = vmatpush1.bf16.msra.mxu0 %v725
    %992 = vmatprep.subr.bf16.mxu0 %v728
    %993 = vmatpush1.bf16.msra.mxu0 %v727
    %994 = vmatprep.subr.bf16.mxu0 %v730
    %995 = vmatpush1.bf16.msra.mxu0 %v729
    %996 = vmatprep.subr.bf16.mxu0 %v732
    %997 = vmatpush1.bf16.msra.mxu0 %v731
    %998 = vmatprep.subr.bf16.mxu0 %v734
    %999 = vmatpush1.bf16.msra.mxu0 %v733
    %1000 = vmatprep.subr.bf16.mxu0 %v736
    %1001 = vmatpush1.bf16.msra.mxu0 %v735
    %1002 = vmatprep.subr.bf16.mxu0 %v738
    %1003 = vmatpush1.bf16.msra.mxu0 %v737
    %1004 = vmatprep.subr.bf16.mxu0 %v740
    %1005 = vmatpush1.bf16.msra.mxu0 %v739
    %1006 = vmatprep.subr.bf16.mxu0 %v742
    %1007 = vmatpush1.bf16.msra.mxu0 %v741
    %1008 = vmatprep.subr.bf16.mxu0 %v744
    %1009 = vmatpush1.bf16.msra.mxu0 %v743
    %1010 = vmatprep.subr.bf16.mxu0 %v746
    %1011 = vmatpush1.bf16.msra.mxu0 %v745
    %1012 = vmatprep.subr.bf16.mxu0 %v748
    %1013 = vmatpush1.bf16.msra.mxu0 %v747
    %1014 = vmatprep.subr.bf16.mxu0 %v750
    %1015 = vmatpush1.bf16.msra.mxu0 %v749
    %1016 = vmatprep.subr.bf16.mxu0 %v752
    %1017 = vmatpush1.bf16.msra.mxu0 %v751
    %1018 = vmatprep.subr.bf16.mxu0 %v754
    %1019 = vmatpush1.bf16.msra.mxu0 %v753
    %1020 = vmatprep.mubr.bf16.mxu0 %v297
    %1021 = vmatmul.mubr.bf16.gmra.mrb[0].mxu0 %v295
    %v1022 = vpop.f32.mrb[0].mxu0
    %v1023 = vadd.f32 %v982, %v1022
    %v1024 = vpop.f32.mrb[0].mxu0
    %v1025 = vadd.f32 %v984, %v1024
    %v1026 = vpop.f32.mrb[0].mxu0
    %v1027 = vpop.f32.mrb[0].mxu0
    %1028 = vdwg.mxu0
    %1029 = vmatprep.subr.bf16.mxu0 %v756
    %1030 = vmatpush1.bf16.msra.mxu0 %v755
    %1031 = vmatprep.subr.bf16.mxu0 %v758
    %1032 = vmatpush1.bf16.msra.mxu0 %v757
    %1033 = vmatprep.subr.bf16.mxu0 %v760
    %1034 = vmatpush1.bf16.msra.mxu0 %v759
    %1035 = vmatprep.subr.bf16.mxu0 %v762
    %1036 = vmatpush1.bf16.msra.mxu0 %v761
    %1037 = vmatprep.subr.bf16.mxu0 %v764
    %1038 = vmatpush1.bf16.msra.mxu0 %v763
    %1039 = vmatprep.subr.bf16.mxu0 %v766
    %1040 = vmatpush1.bf16.msra.mxu0 %v765
    %1041 = vmatprep.subr.bf16.mxu0 %v768
    %1042 = vmatpush1.bf16.msra.mxu0 %v767
    %1043 = vmatprep.subr.bf16.mxu0 %v770
    %1044 = vmatpush1.bf16.msra.mxu0 %v769
    %1045 = vmatprep.subr.bf16.mxu0 %v772
    %1046 = vmatpush1.bf16.msra.mxu0 %v771
    %1047 = vmatprep.subr.bf16.mxu0 %v774
    %1048 = vmatpush1.bf16.msra.mxu0 %v773
    %1049 = vmatprep.subr.bf16.mxu0 %v776
    %1050 = vmatpush1.bf16.msra.mxu0 %v775
    %1051 = vmatprep.subr.bf16.mxu0 %v778
    %1052 = vmatpush1.bf16.msra.mxu0 %v777
    %1053 = vmatprep.subr.bf16.mxu0 %v780
    %1054 = vmatpush1.bf16.msra.mxu0 %v779
    %1055 = vmatprep.subr.bf16.mxu0 %v782
    %1056 = vmatpush1.bf16.msra.mxu0 %v781
    %1057 = vmatprep.subr.bf16.mxu0 %v784
    %1058 = vmatpush1.bf16.msra.mxu0 %v783
    %1059 = vmatprep.subr.bf16.mxu0 %v786
    %1060 = vmatpush1.bf16.msra.mxu0 %v785
    %1061 = vmatprep.mubr.bf16.mxu0 %v294
    %1062 = vmatmul.mubr.bf16.gmra.mrb[0].mxu0 %v280
    %v1063 = vpop.f32.mrb[0].mxu0
    %v1064 = vadd.f32 %v1023, %v1063
    %v1065 = vpop.f32.mrb[0].mxu0
    %v1066 = vadd.f32 %v1025, %v1065
    %v1067 = vpop.f32.mrb[0].mxu0
    %v1068 = vpop.f32.mrb[0].mxu0
    %1069 = vdwg.mxu0
    %1070 = vmatprep.subr.bf16.mxu0 %v788
    %1071 = vmatpush1.bf16.msra.mxu0 %v787
    %1072 = vmatprep.subr.bf16.mxu0 %v790
    %1073 = vmatpush1.bf16.msra.mxu0 %v789
    %1074 = vmatprep.subr.bf16.mxu0 %v792
    %1075 = vmatpush1.bf16.msra.mxu0 %v791
    %1076 = vmatprep.subr.bf16.mxu0 %v794
    %1077 = vmatpush1.bf16.msra.mxu0 %v793
    %1078 = vmatprep.subr.bf16.mxu0 %v796
    %1079 = vmatpush1.bf16.msra.mxu0 %v795
    %1080 = vmatprep.subr.bf16.mxu0 %v798
    %1081 = vmatpush1.bf16.msra.mxu0 %v797
    %1082 = vmatprep.subr.bf16.mxu0 %v800
    %1083 = vmatpush1.bf16.msra.mxu0 %v799
    %1084 = vmatprep.subr.bf16.mxu0 %v802
    %1085 = vmatpush1.bf16.msra.mxu0 %v801
    %1086 = vmatprep.subr.bf16.mxu0 %v804
    %1087 = vmatpush1.bf16.msra.mxu0 %v803
    %1088 = vmatprep.subr.bf16.mxu0 %v806
    %1089 = vmatpush1.bf16.msra.mxu0 %v805
    %1090 = vmatprep.subr.bf16.mxu0 %v808
    %1091 = vmatpush1.bf16.msra.mxu0 %v807
    %1092 = vmatprep.subr.bf16.mxu0 %v810
    %1093 = vmatpush1.bf16.msra.mxu0 %v809
    %1094 = vmatprep.subr.bf16.mxu0 %v812
    %1095 = vmatpush1.bf16.msra.mxu0 %v811
    %1096 = vmatprep.subr.bf16.mxu0 %v814
    %1097 = vmatpush1.bf16.msra.mxu0 %v813
    %1098 = vmatprep.subr.bf16.mxu0 %v816
    %1099 = vmatpush1.bf16.msra.mxu0 %v815
    %1100 = vmatprep.subr.bf16.mxu0 %v818
    %1101 = vmatpush1.bf16.msra.mxu0 %v817
    %1102 = vmatprep.mubr.bf16.mxu0 %v298
    %1103 = vmatmul.mubr.bf16.gmra.mrb[0].mxu0 %v296
    %v1104 = vpop.f32.mrb[0].mxu0
    %v1105 = vadd.f32 %v1064, %v1104
    %v1106 = vpop.f32.mrb[0].mxu0
    %v1107 = vadd.f32 %v1066, %v1106
    %v1108 = vpop.f32.mrb[0].mxu0
    %v1109 = vpop.f32.mrb[0].mxu0
    %1110 = vdwg.mxu0
    %v1111 = vmax.f32 %v1105, 0.0
    %v1112 = vmax.f32 %v1107, 0.0
    %v1113 = vpack.c.bf16 %v1111, %v1111
    %v1114 = vpack.c.bf16 %v1112, %v1112
    %v1115 = vld [vmem:[#allocation7] sm:$0xff]
    %v1116 = vld [vmem:[#allocation7 + $0x8] sm:$0xff]
    %v1117 = vld [vmem:[#allocation7 + $0x10] sm:$0xff]
    %v1118 = vld [vmem:[#allocation7 + $0x18] sm:$0xff]
    %v1119 = vld [vmem:[#allocation7 + $0x20] sm:$0xff]
    %v1120 = vld [vmem:[#allocation7 + $0x28] sm:$0xff]
    %v1121 = vld [vmem:[#allocation7 + $0x30] sm:$0xff]
    %v1122 = vld [vmem:[#allocation7 + $0x38] sm:$0xff]
    %v1123 = vld [vmem:[#allocation7 + $0x40] sm:$0xff]
    %v1124 = vld [vmem:[#allocation7 + $0x48] sm:$0xff]
    %v1125 = vld [vmem:[#allocation7 + $0x50] sm:$0xff]
    %v1126 = vld [vmem:[#allocation7 + $0x58] sm:$0xff]
    %v1127 = vld [vmem:[#allocation7 + $0x60] sm:$0xff]
    %v1128 = vld [vmem:[#allocation7 + $0x68] sm:$0xff]
    %v1129 = vld [vmem:[#allocation7 + $0x70] sm:$0xff]
    %v1130 = vld [vmem:[#allocation7 + $0x78] sm:$0xff]
    %v1131 = vld [vmem:[#allocation7 + $0x80] sm:$0xff]
    %v1132 = vld [vmem:[#allocation7 + $0x88] sm:$0xff]
    %v1133 = vld [vmem:[#allocation7 + $0x90] sm:$0xff]
    %v1134 = vld [vmem:[#allocation7 + $0x98] sm:$0xff]
    %v1135 = vld [vmem:[#allocation7 + $0xa0] sm:$0xff]
    %v1136 = vld [vmem:[#allocation7 + $0xa8] sm:$0xff]
    %v1137 = vld [vmem:[#allocation7 + $0xb0] sm:$0xff]
    %v1138 = vld [vmem:[#allocation7 + $0xb8] sm:$0xff]
    %v1139 = vld [vmem:[#allocation7 + $0xc0] sm:$0xff]
    %v1140 = vld [vmem:[#allocation7 + $0xc8] sm:$0xff]
    %v1141 = vld [vmem:[#allocation7 + $0xd0] sm:$0xff]
    %v1142 = vld [vmem:[#allocation7 + $0xd8] sm:$0xff]
    %v1143 = vld [vmem:[#allocation7 + $0xe0] sm:$0xff]
    %v1144 = vld [vmem:[#allocation7 + $0xe8] sm:$0xff]
    %v1145 = vld [vmem:[#allocation7 + $0xf0] sm:$0xff]
    %v1146 = vld [vmem:[#allocation7 + $0xf8] sm:$0xff]
    %v1147 = vld [vmem:[%s4] sm:$0x3]
    %v1149 = vlaneseq
    %v1150 = vshrl.u32 %v1149, 7
    %v1151 = vsub.s32 0, %v1150
    %v1152 = vrot.slane %v1147, %v1151
    %v1153 = vlaneseq
    %v1154 = vshrl.u32 %v1153, 7
    %v1155 = vsub.s32 1, %v1154
    %v1156 = vrot.slane %v1147, %v1155
    %v1191 = vunpack.c.l.b16 %v1115
    %v1192 = vunpack.c.h.b16 %v1115
    %v1193 = vunpack.c.l.b16 %v1116
    %v1194 = vunpack.c.h.b16 %v1116
    %v1195 = vunpack.c.l.b16 %v1117
    %v1196 = vunpack.c.h.b16 %v1117
    %v1197 = vunpack.c.l.b16 %v1118
    %v1198 = vunpack.c.h.b16 %v1118
    %v1199 = vunpack.c.l.b16 %v1119
    %v1200 = vunpack.c.h.b16 %v1119
    %v1201 = vunpack.c.l.b16 %v1120
    %v1202 = vunpack.c.h.b16 %v1120
    %v1203 = vunpack.c.l.b16 %v1121
    %v1204 = vunpack.c.h.b16 %v1121
    %v1205 = vunpack.c.l.b16 %v1122
    %v1206 = vunpack.c.h.b16 %v1122
    %v1207 = vunpack.c.l.b16 %v1123
    %v1208 = vunpack.c.h.b16 %v1123
    %v1209 = vunpack.c.l.b16 %v1124
    %v1210 = vunpack.c.h.b16 %v1124
    %v1211 = vunpack.c.l.b16 %v1125
    %v1212 = vunpack.c.h.b16 %v1125
    %v1213 = vunpack.c.l.b16 %v1126
    %v1214 = vunpack.c.h.b16 %v1126
    %v1215 = vunpack.c.l.b16 %v1127
    %v1216 = vunpack.c.h.b16 %v1127
    %v1217 = vunpack.c.l.b16 %v1128
    %v1218 = vunpack.c.h.b16 %v1128
    %v1219 = vunpack.c.l.b16 %v1129
    %v1220 = vunpack.c.h.b16 %v1129
    %v1221 = vunpack.c.l.b16 %v1130
    %v1222 = vunpack.c.h.b16 %v1130
    %v1223 = vunpack.c.l.b16 %v1131
    %v1224 = vunpack.c.h.b16 %v1131
    %v1225 = vunpack.c.l.b16 %v1132
    %v1226 = vunpack.c.h.b16 %v1132
    %v1227 = vunpack.c.l.b16 %v1133
    %v1228 = vunpack.c.h.b16 %v1133
    %v1229 = vunpack.c.l.b16 %v1134
    %v1230 = vunpack.c.h.b16 %v1134
    %v1231 = vunpack.c.l.b16 %v1135
    %v1232 = vunpack.c.h.b16 %v1135
    %v1233 = vunpack.c.l.b16 %v1136
    %v1234 = vunpack.c.h.b16 %v1136
    %v1235 = vunpack.c.l.b16 %v1137
    %v1236 = vunpack.c.h.b16 %v1137
    %v1237 = vunpack.c.l.b16 %v1138
    %v1238 = vunpack.c.h.b16 %v1138
    %v1239 = vunpack.c.l.b16 %v1139
    %v1240 = vunpack.c.h.b16 %v1139
    %v1241 = vunpack.c.l.b16 %v1140
    %v1242 = vunpack.c.h.b16 %v1140
    %v1243 = vunpack.c.l.b16 %v1141
    %v1244 = vunpack.c.h.b16 %v1141
    %v1245 = vunpack.c.l.b16 %v1142
    %v1246 = vunpack.c.h.b16 %v1142
    %v1247 = vunpack.c.l.b16 %v1143
    %v1248 = vunpack.c.h.b16 %v1143
    %v1249 = vunpack.c.l.b16 %v1144
    %v1250 = vunpack.c.h.b16 %v1144
    %v1251 = vunpack.c.l.b16 %v1145
    %v1252 = vunpack.c.h.b16 %v1145
    %v1253 = vunpack.c.l.b16 %v1146
    %v1254 = vunpack.c.h.b16 %v1146
    %v1255 = vpack.c.b16 %v1193, %v1191
    %v1256 = vpack.c.b16 %v1194, %v1192
    %v1257 = vpack.c.b16 %v1197, %v1195
    %v1258 = vpack.c.b16 %v1198, %v1196
    %v1259 = vpack.c.b16 %v1201, %v1199
    %v1260 = vpack.c.b16 %v1202, %v1200
    %v1261 = vpack.c.b16 %v1205, %v1203
    %v1262 = vpack.c.b16 %v1206, %v1204
    %v1263 = vpack.c.b16 %v1209, %v1207
    %v1264 = vpack.c.b16 %v1210, %v1208
    %v1265 = vpack.c.b16 %v1213, %v1211
    %v1266 = vpack.c.b16 %v1214, %v1212
    %v1267 = vpack.c.b16 %v1217, %v1215
    %v1268 = vpack.c.b16 %v1218, %v1216
    %v1269 = vpack.c.b16 %v1221, %v1219
    %v1270 = vpack.c.b16 %v1222, %v1220
    %v1271 = vpack.c.b16 %v1225, %v1223
    %v1272 = vpack.c.b16 %v1226, %v1224
    %v1273 = vpack.c.b16 %v1229, %v1227
    %v1274 = vpack.c.b16 %v1230, %v1228
    %v1275 = vpack.c.b16 %v1233, %v1231
    %v1276 = vpack.c.b16 %v1234, %v1232
    %v1277 = vpack.c.b16 %v1237, %v1235
    %v1278 = vpack.c.b16 %v1238, %v1236
    %v1279 = vpack.c.b16 %v1241, %v1239
    %v1280 = vpack.c.b16 %v1242, %v1240
    %v1281 = vpack.c.b16 %v1245, %v1243
    %v1282 = vpack.c.b16 %v1246, %v1244
    %v1283 = vpack.c.b16 %v1249, %v1247
    %v1284 = vpack.c.b16 %v1250, %v1248
    %v1285 = vpack.c.b16 %v1253, %v1251
    %v1286 = vpack.c.b16 %v1254, %v1252
    %1319 = vmatprep.subr.bf16.mxu0 %v1256
    %1320 = vmatpush1.bf16.msra.mxu0 %v1255
    %1321 = vmatprep.subr.bf16.mxu0 %v1258
    %1322 = vmatpush1.bf16.msra.mxu0 %v1257
    %1323 = vmatprep.subr.bf16.mxu0 %v1260
    %1324 = vmatpush1.bf16.msra.mxu0 %v1259
    %1325 = vmatprep.subr.bf16.mxu0 %v1262
    %1326 = vmatpush1.bf16.msra.mxu0 %v1261
    %1327 = vmatprep.subr.bf16.mxu0 %v1264
    %1328 = vmatpush1.bf16.msra.mxu0 %v1263
    %1329 = vmatprep.subr.bf16.mxu0 %v1266
    %1330 = vmatpush1.bf16.msra.mxu0 %v1265
    %1331 = vmatprep.subr.bf16.mxu0 %v1268
    %1332 = vmatpush1.bf16.msra.mxu0 %v1267
    %1333 = vmatprep.subr.bf16.mxu0 %v1270
    %1334 = vmatpush1.bf16.msra.mxu0 %v1269
    %1335 = vmatprep.subr.bf16.mxu0 %v1272
    %1336 = vmatpush1.bf16.msra.mxu0 %v1271
    %1337 = vmatprep.subr.bf16.mxu0 %v1274
    %1338 = vmatpush1.bf16.msra.mxu0 %v1273
    %1339 = vmatprep.subr.bf16.mxu0 %v1276
    %1340 = vmatpush1.bf16.msra.mxu0 %v1275
    %1341 = vmatprep.subr.bf16.mxu0 %v1278
    %1342 = vmatpush1.bf16.msra.mxu0 %v1277
    %1343 = vmatprep.subr.bf16.mxu0 %v1280
    %1344 = vmatpush1.bf16.msra.mxu0 %v1279
    %1345 = vmatprep.subr.bf16.mxu0 %v1282
    %1346 = vmatpush1.bf16.msra.mxu0 %v1281
    %1347 = vmatprep.subr.bf16.mxu0 %v1284
    %1348 = vmatpush1.bf16.msra.mxu0 %v1283
    %1349 = vmatprep.subr.bf16.mxu0 %v1286
    %1350 = vmatpush1.bf16.msra.mxu0 %v1285
    %1351 = vmatprep.mubr.bf16.mxu0 %v1114
    %1352 = vmatmul.mubr.bf16.gmra.mrb[0].mxu0 %v1113
    %v1353 = vpop.f32.mrb[0].mxu0
    %v1354 = vadd.f32 %v1152, %v1353
    %v1355 = vpop.f32.mrb[0].mxu0
    %v1356 = vadd.f32 %v1156, %v1355
    %v1357 = vpop.f32.mrb[0].mxu0
    %v1358 = vpop.f32.mrb[0].mxu0
    %1359 = vdwg.mxu0
    %v1360 = vmax.f32 %v1354, 0.0
    %v1361 = vmax.f32 %v1356, 0.0
    %v1362 = vpack.c.bf16 %v1360, %v1360
    %v1363 = vpack.c.bf16 %v1361, %v1361
    %v1364 = vld [vmem:[#allocation8] sm:$0xf]
    %v1365 = vld [vmem:[#allocation8 + $0x4] sm:$0xf]
    %v1366 = vld [vmem:[#allocation8 + $0x8] sm:$0xf]
    %v1367 = vld [vmem:[#allocation8 + $0xc] sm:$0xf]
    %v1368 = vld [vmem:[#allocation8 + $0x10] sm:$0xf]
    %v1369 = vld [vmem:[#allocation8 + $0x14] sm:$0xf]
    %v1370 = vld [vmem:[#allocation8 + $0x18] sm:$0xf]
    %v1371 = vld [vmem:[#allocation8 + $0x1c] sm:$0xf]
    %v1372 = vld [vmem:[#allocation8 + $0x20] sm:$0xf]
    %v1373 = vld [vmem:[#allocation8 + $0x24] sm:$0xf]
    %v1374 = vld [vmem:[#allocation8 + $0x28] sm:$0xf]
    %v1375 = vld [vmem:[#allocation8 + $0x2c] sm:$0xf]
    %v1376 = vld [vmem:[#allocation8 + $0x30] sm:$0xf]
    %v1377 = vld [vmem:[#allocation8 + $0x34] sm:$0xf]
    %v1378 = vld [vmem:[#allocation8 + $0x38] sm:$0xf]
    %v1379 = vld [vmem:[#allocation8 + $0x3c] sm:$0xf]
    %v1380 = vld [vmem:[#allocation8 + $0x40] sm:$0xf]
    %v1381 = vld [vmem:[#allocation8 + $0x44] sm:$0xf]
    %v1382 = vld [vmem:[#allocation8 + $0x48] sm:$0xf]
    %v1383 = vld [vmem:[#allocation8 + $0x4c] sm:$0xf]
    %v1384 = vld [vmem:[#allocation8 + $0x50] sm:$0xf]
    %v1385 = vld [vmem:[#allocation8 + $0x54] sm:$0xf]
    %v1386 = vld [vmem:[#allocation8 + $0x58] sm:$0xf]
    %v1387 = vld [vmem:[#allocation8 + $0x5c] sm:$0xf]
    %v1388 = vld [vmem:[#allocation8 + $0x60] sm:$0xf]
    %v1389 = vld [vmem:[#allocation8 + $0x64] sm:$0xf]
    %v1390 = vld [vmem:[#allocation8 + $0x68] sm:$0xf]
    %v1391 = vld [vmem:[#allocation8 + $0x6c] sm:$0xf]
    %v1392 = vld [vmem:[#allocation8 + $0x70] sm:$0xf]
    %v1393 = vld [vmem:[#allocation8 + $0x74] sm:$0xf]
    %v1394 = vld [vmem:[#allocation8 + $0x78] sm:$0xf]
    %v1395 = vld [vmem:[#allocation8 + $0x7c] sm:$0xf]
    %v1396 = vld [vmem:[%s6] sm:$0x1]
    %v1398 = vlaneseq
    %v1399 = vshrl.u32 %v1398, 7
    %v1400 = vsub.s32 0, %v1399
    %v1401 = vrot.slane %v1396, %v1400
    %v1435 = vunpack.c.l.b16 %v1364
    %v1436 = vunpack.c.l.b16 %v1365
    %v1437 = vunpack.c.l.b16 %v1366
    %v1438 = vunpack.c.l.b16 %v1367
    %v1439 = vunpack.c.l.b16 %v1368
    %v1440 = vunpack.c.l.b16 %v1369
    %v1441 = vunpack.c.l.b16 %v1370
    %v1442 = vunpack.c.l.b16 %v1371
    %v1443 = vunpack.c.l.b16 %v1372
    %v1444 = vunpack.c.l.b16 %v1373
    %v1445 = vunpack.c.l.b16 %v1374
    %v1446 = vunpack.c.l.b16 %v1375
    %v1447 = vunpack.c.l.b16 %v1376
    %v1448 = vunpack.c.l.b16 %v1377
    %v1449 = vunpack.c.l.b16 %v1378
    %v1450 = vunpack.c.l.b16 %v1379
    %v1451 = vunpack.c.l.b16 %v1380
    %v1452 = vunpack.c.l.b16 %v1381
    %v1453 = vunpack.c.l.b16 %v1382
    %v1454 = vunpack.c.l.b16 %v1383
    %v1455 = vunpack.c.l.b16 %v1384
    %v1456 = vunpack.c.l.b16 %v1385
    %v1457 = vunpack.c.l.b16 %v1386
    %v1458 = vunpack.c.l.b16 %v1387
    %v1459 = vunpack.c.l.b16 %v1388
    %v1460 = vunpack.c.l.b16 %v1389
    %v1461 = vunpack.c.l.b16 %v1390
    %v1462 = vunpack.c.l.b16 %v1391
    %v1463 = vunpack.c.l.b16 %v1392
    %v1464 = vunpack.c.l.b16 %v1393
    %v1465 = vunpack.c.l.b16 %v1394
    %v1466 = vunpack.c.l.b16 %v1395
    %v1467 = vpack.c.b16 %v1436, %v1435
    %v1468 = vpack.c.b16 %v1438, %v1437
    %v1469 = vpack.c.b16 %v1440, %v1439
    %v1470 = vpack.c.b16 %v1442, %v1441
    %v1471 = vpack.c.b16 %v1444, %v1443
    %v1472 = vpack.c.b16 %v1446, %v1445
    %v1473 = vpack.c.b16 %v1448, %v1447
    %v1474 = vpack.c.b16 %v1450, %v1449
    %v1475 = vpack.c.b16 %v1452, %v1451
    %v1476 = vpack.c.b16 %v1454, %v1453
    %v1477 = vpack.c.b16 %v1456, %v1455
    %v1478 = vpack.c.b16 %v1458, %v1457
    %v1479 = vpack.c.b16 %v1460, %v1459
    %v1480 = vpack.c.b16 %v1462, %v1461
    %v1481 = vpack.c.b16 %v1464, %v1463
    %v1482 = vpack.c.b16 %v1466, %v1465
    %1499 = vmatprep.subr.bf16.mxu0 0
    %1500 = vmatpush1.bf16.msra.mxu0 %v1467
    %1501 = vmatprep.subr.bf16.mxu0 0
    %1502 = vmatpush1.bf16.msra.mxu0 %v1468
    %1503 = vmatprep.subr.bf16.mxu0 0
    %1504 = vmatpush1.bf16.msra.mxu0 %v1469
    %1505 = vmatprep.subr.bf16.mxu0 0
    %1506 = vmatpush1.bf16.msra.mxu0 %v1470
    %1507 = vmatprep.subr.bf16.mxu0 0
    %1508 = vmatpush1.bf16.msra.mxu0 %v1471
    %1509 = vmatprep.subr.bf16.mxu0 0
    %1510 = vmatpush1.bf16.msra.mxu0 %v1472
    %1511 = vmatprep.subr.bf16.mxu0 0
    %1512 = vmatpush1.bf16.msra.mxu0 %v1473
    %1513 = vmatprep.subr.bf16.mxu0 0
    %1514 = vmatpush1.bf16.msra.mxu0 %v1474
    %1515 = vmatprep.subr.bf16.mxu0 0
    %1516 = vmatpush1.bf16.msra.mxu0 %v1475
    %1517 = vmatprep.subr.bf16.mxu0 0
    %1518 = vmatpush1.bf16.msra.mxu0 %v1476
    %1519 = vmatprep.subr.bf16.mxu0 0
    %1520 = vmatpush1.bf16.msra.mxu0 %v1477
    %1521 = vmatprep.subr.bf16.mxu0 0
    %1522 = vmatpush1.bf16.msra.mxu0 %v1478
    %1523 = vmatprep.subr.bf16.mxu0 0
    %1524 = vmatpush1.bf16.msra.mxu0 %v1479
    %1525 = vmatprep.subr.bf16.mxu0 0
    %1526 = vmatpush1.bf16.msra.mxu0 %v1480
    %1527 = vmatprep.subr.bf16.mxu0 0
    %1528 = vmatpush1.bf16.msra.mxu0 %v1481
    %1529 = vmatprep.subr.bf16.mxu0 0
    %1530 = vmatpush1.bf16.msra.mxu0 %v1482
    %1531 = vmatprep.mubr.bf16.mxu0 %v1363
    %1532 = vmatmul.mubr.bf16.gmra.mrb[0].mxu0 %v1362
    %v1533 = vpop.f32.mrb[0].mxu0
    %v1534 = vadd.f32 %v1401, %v1533
    %v1535 = vpop.f32.mrb[0].mxu0
    %v1536 = vpop.f32.mrb[0].mxu0
    %v1537 = vpop.f32.mrb[0].mxu0
    %1538 = vdwg.mxu0
    %1539 = vst [vmem:[#allocation10] sm:$0xff] %v1534
    // Predicated region
    $region46: #{tpu_custom_call.1} parent=1 // pred_check
      _
    $region47: #{tpu_custom_call.1} parent=1 // pred_check_branch
      %1541 = sbr.rel (0) target = $region49
    $region48: #{tpu_custom_call.1} parent=1 // pred_region
      %s1543 = ssub.s32 128, 32
      %1544 = vsyncadd [#allocation4], %s1543
      %s1545 = sshll.u32 [#allocation10], 4
      %s1546 = int_to_ptr.vmem [resolvable:$true] %s1545
      %1551 = dma.vmem_to_hbm [thread:$0]  %s1546, 32, %s7, [#allocation4], 32, 32, 2
    $region49: #{tpu_custom_call.1} parent=1 // pred_fallthru
      _
    // Predicated region
    $region50: #{tpu_custom_call.1} parent=1 // pred_check
      _
    $region51: #{tpu_custom_call.1} parent=1 // pred_check_branch
      %1553 = sbr.rel (0) target = $region53
    $region52: #{tpu_custom_call.1} parent=1 // pred_region
      %1554 = dma.done [#allocation4], 128
    $region53: #{tpu_custom_call.1} parent=1 // pred_fallthru
      _
    %1555 = vsyncpa [#allocation3], 1
    %1556 = vsyncpa [#allocation6], 1
    %1557 = vsyncpa [#allocation9], 1
    %1558 = vsyncpa [#allocation4], 1

</llo_original>
